<compile_context>
chip_gen: v5e
topology: v5e:2x2
jax: 0.10.0
libtpu: 0.0.40
codegen_flags: <defaults>
</compile_context>

<pallas_src>
import functools
import math

import jax
import jax.numpy as jnp
import numpy as np
from jax.experimental import pallas as pl
from jax.experimental.pallas import tpu as pltpu

# Single source of truth for the "no edge" sentinel; the row guard is derived
# from it so the two constants cannot drift apart.
_MASK_NEG = -1.0e30            # score assigned to non-edges (exp underflows to 0)
_MASK_GUARD = _MASK_NEG * 0.5  # smax above this <=> row has at least one edge


# ----------------------------------------------------------------------------
# Kernels
# ----------------------------------------------------------------------------
def _qkv_kernel(x_ref, wq_ref, wk_ref, wv_ref, bq_ref, bk_ref, bv_ref,
                q_ref, k_ref, v_ref):
    # Fused Q/K/V projection: bf16 MXU operands, f32 accumulate + bias, bf16 out.
    x = x_ref[...].astype(jnp.bfloat16)
    q_ref[...] = (jnp.dot(x, wq_ref[...], preferred_element_type=jnp.float32)
                  + bq_ref[...]).astype(q_ref.dtype)
    k_ref[...] = (jnp.dot(x, wk_ref[...], preferred_element_type=jnp.float32)
                  + bk_ref[...]).astype(k_ref.dtype)
    v_ref[...] = (jnp.dot(x, wv_ref[...], preferred_element_type=jnp.float32)
                  + bv_ref[...]).astype(v_ref.dtype)


def _linear_skip_kernel(x_ref, w_ref, b_ref, res_ref, alpha_ref, o_ref):
    # out = alpha * (x @ W_t + b) + (1 - alpha) * residual
    # MXU operands bf16, all elementwise / residual math in f32.
    y = (jnp.dot(x_ref[...].astype(jnp.bfloat16), w_ref[...],
                 preferred_element_type=jnp.float32) + b_ref[...])
    a = alpha_ref[0]
    o_ref[...] = a * y + (1.0 - a) * res_ref[...]


def _hgt_attn_kernel(q_ref, k_ref, v_ref, a_ref, m_ref, mask_ref, o_ref,
                     *, num_heads):
    # grid = (Nt_tiles "parallel", R "arbitrary").  The output block index only
    # depends on the Nt tile, so it stays resident in VMEM and accumulates the
    # per-relation contributions across the inner relation axis.
    r = pl.program_id(1)

    @pl.when(r == 0)
    def _():
        o_ref[...] = jnp.zeros_like(o_ref)

    q = q_ref[...]        # (tq, HD)  bf16 dst-node queries, all heads fused
    k = k_ref[0]          # (Ns, HD)  bf16 src-node keys (zero-padded rows ok)
    v = v_ref[0]          # (Ns, HD)  bf16 src-node values
    a_t = a_ref[0]        # (HD, HD)  bf16 block-diag a_rel^T, p_rel/sqrt(D) folded
    m = m_ref[0]          # (HD, HD)  bf16 block-diag m_rel
    mask = mask_ref[0]    # (tq, Ns)  int8: 1 = edge, 0 = no edge

    tq, hd = q.shape
    ns = k.shape[0]
    h = num_heads
    d = hd // h

    # Relation transform on the (tiled, smaller) query side:
    #   q . (k A)^T == (q A^T) . k^T   per head.
    qp = jnp.dot(q, a_t, preferred_element_type=jnp.float32)         # (tq, HD)

    # Per-head scores: bf16 MXU operands, f32 accumulate.
    q3 = qp.astype(jnp.bfloat16).reshape(tq, h, d)
    k3 = k.reshape(ns, h, d)
    s = jnp.einsum('thd,shd->hts', q3, k3,
                   preferred_element_type=jnp.float32)                # (H,tq,Ns)
    edge = (mask > 0)[None, :, :]
    s = jnp.where(edge, s, _MASK_NEG)                                 # f32 masking

    # Segment softmax; rows with no edges contribute exactly zero.
    smax = jnp.max(s, axis=-1, keepdims=True)
    smax = jnp.where(smax > _MASK_GUARD, smax, 0.0)
    p = jnp.exp(s - smax)                                             # masked -> 0
    denom = jnp.sum(p, axis=-1)                                       # (H, tq)
    inv = 1.0 / jnp.maximum(denom, 1e-30)                             # exact, f32

    # Aggregate first, normalize after: Nt*HD multiplies instead of H*Nt*Ns,
    # and no live (H, Nt, Ns) normalized intermediate.
    agg = jnp.einsum('hts,shd->thd', p.astype(jnp.bfloat16),
                     v.reshape(ns, h, d),
                     preferred_element_type=jnp.float32)              # (tq,H,D)
    agg = agg * jnp.transpose(inv)[:, :, None]                        # f32
    # m_rel applied AFTER aggregation: (attn @ v) @ M == attn @ (v @ M).
    o_ref[...] += jnp.dot(agg.reshape(tq, hd).astype(jnp.bfloat16), m,
                          preferred_element_type=jnp.float32)


# ----------------------------------------------------------------------------
# Wrappers
# ----------------------------------------------------------------------------
def _ceil_to(n, m):
    return ((n + m - 1) // m) * m


def _row_tile(n, target=256):
    if n <= target:
        return n
    for t in (target, 128, 64, 32, 16, 8):
        if n % t == 0:
            return t
    return n


def _attn_row_tile(nt_pad):
    # nt_pad is always a multiple of 32 (int8 mask sublane tile), so 32 divides.
    if nt_pad <= 256:
        return nt_pad
    for t in (256, 128, 64, 32):
        if nt_pad % t == 0:
            return t
    return 32


def pallas_linear_qkv(x, wq_t, wk_t, wv_t, bq, bk, bv):
    # x: (N, Fin) f32; w*_t: (Fin, Fout) bf16 pre-transposed; b*: (Fout,) f32.
    # Three separate lane-aligned bf16 outputs -> no unaligned column slicing
    # (and no XLA relayout round-trips) between this call and attention.
    n, fin = x.shape
    fout = wq_t.shape[1]
    tm = _row_tile(n)
    out_sd = jax.ShapeDtypeStruct((n, fout), jnp.bfloat16)
    w_spec = pl.BlockSpec((fin, fout), lambda i: (0, 0))
    b_spec = pl.BlockSpec((1, fout), lambda i: (0, 0))
    o_spec = pl.BlockSpec((tm, fout), lambda i: (i, 0))
    return pl.pallas_call(
        _qkv_kernel,
        out_shape=(out_sd, out_sd, out_sd),
        grid=(n // tm,),
        in_specs=[
            pl.BlockSpec((tm, fin), lambda i: (i, 0)),
            w_spec, w_spec, w_spec, b_spec, b_spec, b_spec,
        ],
        out_specs=(o_spec, o_spec, o_spec),
        compiler_params=pltpu.CompilerParams(
            dimension_semantics=("parallel",)),
    )(x, wq_t, wk_t, wv_t,
      bq.reshape(1, -1), bk.reshape(1, -1), bv.reshape(1, -1))


def pallas_linear_skip(x, w_t, b, residual, alpha):
    # x: (N, Fin) f32 accumulator, w_t: (Fin, Fout) bf16, residual f32.
    n, fin = x.shape
    fout = w_t.shape[1]
    tm = _row_tile(n)
    return pl.pallas_call(
        _linear_skip_kernel,
        out_shape=jax.ShapeDtypeStruct((n, fout), jnp.float32),
        grid=(n // tm,),
        in_specs=[
            pl.BlockSpec((tm, fin), lambda i: (i, 0)),
            pl.BlockSpec((fin, fout), lambda i: (0, 0)),
            pl.BlockSpec((1, fout), lambda i: (0, 0)),
            pl.BlockSpec((tm, fout), lambda i: (i, 0)),
            pl.BlockSpec(memory_space=pltpu.MemorySpace.SMEM),
        ],
        out_specs=pl.BlockSpec((tm, fout), lambda i: (i, 0)),
        compiler_params=pltpu.CompilerParams(
            dimension_semantics=("parallel",)),
    )(x, w_t, b.reshape(1, -1), residual, alpha)


def pallas_hgt_attention(q, k_stack, v_stack, a_stack, m_stack, mask_stack,
                         *, num_heads, tq):
    # q: (Nt_pad, HD) bf16; *_stack leading axis R = relations for this dst type.
    nt_pad, hd = q.shape
    r_cnt, ns_pad, _ = k_stack.shape
    kernel = functools.partial(_hgt_attn_kernel, num_heads=num_heads)
    # TODO(synk): for graphs with Ns beyond a few thousand, add an inner
    # "arbitrary" Ns-tile grid axis with an online softmax (running max/denom in
    # VMEM scratch) so the (tq, Ns) mask/score tile no longer needs to be fully
    # resident; then consider pipeline_mode=pl.Buffered(3) on the k/v/mask specs
    # if the bundle dump shows exposed DMA.
    return pl.pallas_call(
        kernel,
        out_shape=jax.ShapeDtypeStruct((nt_pad, hd), jnp.float32),
        grid=(nt_pad // tq, r_cnt),
        in_specs=[
            pl.BlockSpec((tq, hd), lambda i, r: (i, 0)),            # q tile
            pl.BlockSpec((1, ns_pad, hd), lambda i, r: (r, 0, 0)),  # k
            pl.BlockSpec((1, ns_pad, hd), lambda i, r: (r, 0, 0)),  # v
            pl.BlockSpec((1, hd, hd), lambda i, r: (r, 0, 0)),      # a_rel^T bd
            pl.BlockSpec((1, hd, hd), lambda i, r: (r, 0, 0)),      # m_rel bd
            pl.BlockSpec((1, tq, ns_pad), lambda i, r: (r, i, 0)),  # int8 mask
        ],
        out_specs=pl.BlockSpec((tq, hd), lambda i, r: (i, 0)),      # accumulator
        compiler_params=pltpu.CompilerParams(
            dimension_semantics=("parallel", "arbitrary"),
            # Explicit VMEM budget so the same tiling stays valid on v7x
            # (64 MiB physical / 32 MiB default-scoped) as well as v5e/v6e.
            vmem_limit_bytes=32 * 1024 * 1024),
    )(q, k_stack, v_stack, a_stack, m_stack, mask_stack)


# ----------------------------------------------------------------------------
# HGTConv forward (glue in plain JAX, hot paths in Pallas)
# ----------------------------------------------------------------------------
def _block_diag(w):
    # w: (H, D, D) per-head relation matrices -> (H*D, H*D) block-diagonal, so
    # the per-head transform is one lane-dense K=H*D matmul in the kernel.
    # TODO(synk): for production head dims (D >= ~64) switch to a per-head
    # batched dot_general instead of block-diag (avoids H-fold zero MACs).
    h, d, _ = w.shape
    eye = jnp.eye(h, dtype=w.dtype)
    return (eye[:, None, :, None] * w[:, :, None, :]).reshape(h * d, h * d)


def _pad_rows(x, n_pad):
    n = x.shape[0]
    if n == n_pad:
        return x
    return jnp.pad(x, ((0, n_pad - n), (0, 0)))


def hgt_conv_forward(x_dict, mask_dict, params, num_heads, out_dim):
    h = num_heads
    d = out_dim // h
    inv_sqrt_d = 1.0 / math.sqrt(d)

    # ---- fused Q/K/V projection per node type (3 aligned bf16 outputs) -------
    # TODO(synk): at production scale, batch all node types into one pallas_call
    # (stack x / weights over a type axis) to amortize launch overhead.
    q_dict, k_dict, v_dict = {}, {}, {}
    for nt, x in x_dict.items():
        q, k, v = pallas_linear_qkv(
            x,
            params['q_w'][nt].T.astype(jnp.bfloat16),
            params['k_w'][nt].T.astype(jnp.bfloat16),
            params['v_w'][nt].T.astype(jnp.bfloat16),
            params['q_b'][nt], params['k_b'][nt], params['v_b'][nt])
        q_dict[nt], k_dict[nt], v_dict[nt] = q, k, v

    # ---- group relations by destination type; one attention call per dst -----
    rel_by_dst = {}
    for (src, dst), mask in mask_dict.items():
        rel_by_dst.setdefault(dst, []).append((src, '__'.join((src, dst)), mask))

    out_acc = {}
    for dst, rels in rel_by_dst.items():
        nt = x_dict[dst].shape[0]
        nt_pad = _ceil_to(nt, 32)                      # int8 mask sublane tile
        tq = _attn_row_tile(nt_pad)
        ns_pad = _ceil_to(max(x_dict[src].shape[0] for src, _, _ in rels), 128)

        k_stack, v_stack, a_stack, m_stack, mask_stack = [], [], [], [], []
        for src, name, mask in rels:
            k_stack.append(_pad_rows(k_dict[src], ns_pad))
            v_stack.append(_pad_rows(v_dict[src], ns_pad))
            # Fold p_rel[h]/sqrt(D) into a_rel, transpose per head (the kernel
            # applies the transform on the query side), pack block-diagonal.
            a_scaled = (params['a_rel'][name]
                        * (params['p_rel'][name] * inv_sqrt_d)[:, None, None])
            a_stack.append(
                _block_diag(jnp.swapaxes(a_scaled, -1, -2)).astype(jnp.bfloat16))
            m_stack.append(_block_diag(params['m_rel'][name]).astype(jnp.bfloat16))
            mp = jnp.pad((mask > 0.0).astype(jnp.int8),
                         ((0, nt_pad - mask.shape[0]),
                          (0, ns_pad - mask.shape[1])))
            mask_stack.append(mp)

        out = pallas_hgt_attention(
            _pad_rows(q_dict[dst], nt_pad),
            jnp.stack(k_stack), jnp.stack(v_stack),
            jnp.stack(a_stack), jnp.stack(m_stack),
            jnp.stack(mask_stack), num_heads=h, tq=tq)      # (Nt_pad, out) f32
        out_acc[dst] = out[:nt]

    # ---- output projection + gated skip (fused, row-tiled) -------------------
    # TODO(synk): 'mean'/'max' group aggregation not exercised (default 'sum');
    # dropout is 0.0 so the dropout op is a no-op and is omitted.
    result = {}
    for nt, x in x_dict.items():
        acc = out_acc.get(nt)
        if acc is None:
            acc = jnp.zeros((x.shape[0], out_dim), jnp.float32)
        alpha = jax.nn.sigmoid(params['skip'][nt]).reshape(1,)
        result[nt] = pallas_linear_skip(
            acc, params['a_w'][nt].T.astype(jnp.bfloat16),
            params['a_b'][nt], x, alpha)
    return result


# ----------------------------------------------------------------------------
# Pure-JAX edge-list reference (mirrors the torch seg_softmax / seg_sum path)
# ----------------------------------------------------------------------------
def ref_forward(x_dict, edge_index_dict, params, num_heads, out_dim):
    h = num_heads
    d = out_dim // h

    def lin(x, w, b):
        return x @ w.T + b

    q_dict = {nt: lin(x, params['q_w'][nt], params['q_b'][nt]).reshape(-1, h, d)
              for nt, x in x_dict.items()}
    k_dict = {nt: lin(x, params['k_w'][nt], params['k_b'][nt]).reshape(-1, h, d)
              for nt, x in x_dict.items()}
    v_dict = {nt: lin(x, params['v_w'][nt], params['v_b'][nt]).reshape(-1, h, d)
              for nt, x in x_dict.items()}

    out_acc = {nt: jnp.zeros((x.shape[0], out_dim), jnp.float32)
               for nt, x in x_dict.items()}
    for (src, dst), (src_idx, tgt_idx) in edge_index_dict.items():
        name = '__'.join((src, dst))
        kk = jnp.einsum('nhd,hde->nhe', k_dict[src], params['a_rel'][name])
        vv = jnp.einsum('nhd,hde->nhe', v_dict[src], params['m_rel'][name])
        q_i = q_dict[dst][tgt_idx]
        k_j = kk[src_idx]
        v_j = vv[src_idx]
        num_nodes = x_dict[dst].shape[0]
        alpha = (k_j * q_i).sum(-1) * params['p_rel'][name] / math.sqrt(d)
        amax = jax.ops.segment_max(alpha, tgt_idx, num_segments=num_nodes)
        ex = jnp.exp(alpha - amax[tgt_idx])
        denom = jax.ops.segment_sum(ex, tgt_idx, num_segments=num_nodes)
        attn = ex / denom[tgt_idx]
        msg = (v_j * attn[..., None]).reshape(-1, out_dim)
        out = jax.ops.segment_sum(msg, tgt_idx, num_segments=num_nodes)
        out_acc[dst] = out_acc[dst] + out

    result = {}
    for nt, acc in out_acc.items():
        y = lin(acc, params['a_w'][nt], params['a_b'][nt])
        a = jax.nn.sigmoid(params['skip'][nt])
        result[nt] = a * y + (1.0 - a) * x_dict[nt]
    return result


# ----------------------------------------------------------------------------
# Deterministic parameter init (shapes follow HGTConv.__init__, no pre-encoder)
# ----------------------------------------------------------------------------
def init_params(key, node_types, edge_types, out_dim, num_heads):
    d = out_dim // num_heads
    params = {'q_w': {}, 'q_b': {}, 'k_w': {}, 'k_b': {}, 'v_w': {}, 'v_b': {},
              'a_w': {}, 'a_b': {}, 'skip': {}, 'a_rel': {}, 'm_rel': {},
              'p_rel': {}}
    for nt in node_types:
        for p in ('q', 'k', 'v', 'a'):
            key, k1, k2 = jax.random.split(key, 3)
            params[p + '_w'][nt] = (jax.random.normal(k1, (out_dim, out_dim),
                                                      jnp.float32) * 0.1)
            params[p + '_b'][nt] = (jax.random.normal(k2, (out_dim,),
                                                      jnp.float32) * 0.1)
        params['skip'][nt] = jnp.float32(1.0)
    for et in edge_types:
        name = '__'.join(et)
        key, k1, k2 = jax.random.split(key, 3)
        params['a_rel'][name] = jax.random.truncated_normal(
            k1, -2.0, 2.0, (num_heads, d, d), jnp.float32)
        params['m_rel'][name] = jax.random.truncated_normal(
            k2, -2.0, 2.0, (num_heads, d, d), jnp.float32)
        params['p_rel'][name] = jnp.ones((num_heads,), jnp.float32)
    return params


if __name__ == "__main__":
    node_types = ['user', 'item']
    edge_types = [('user', 'item'), ('item', 'user'), ('item', 'item')]
    num_nodes = {'user': 16, 'item': 24}
    out_dim, num_heads = 32, 4

    key = jax.random.PRNGKey(0)
    key, kx1, kx2 = jax.random.split(key, 3)
    x_dict = {
        'user': jax.random.normal(kx1, (num_nodes['user'], out_dim), jnp.float32),
        'item': jax.random.normal(kx2, (num_nodes['item'], out_dim), jnp.float32),
    }

    mask_dict = {}
    for (src, dst) in edge_types:
        key, km = jax.random.split(key)
        m = (jax.random.uniform(km, (num_nodes[dst], num_nodes[src]))
             < 0.3).astype(jnp.float32)
        m = m.at[0, 0].set(1.0)          # guarantee at least one edge
        mask_dict[(src, dst)] = m

    key, kp = jax.random.split(key)
    params = init_params(kp, node_types, edge_types, out_dim, num_heads)

    out = hgt_conv_forward(x_dict, mask_dict, params, num_heads, out_dim)
    out = jax.block_until_ready(out)

    # Correctness check against an edge-list (seg_softmax / seg_sum) f32
    # reference.  Tolerance is looser than f32-exact because all MXU operands
    # (q/k/v storage, relation matrices, attention probabilities, weights) are
    # bf16 with f32 accumulation; the softmax itself and the normalization use
    # exact f32 math.
    edge_index_dict = {}
    for et, m in mask_dict.items():
        t_idx, s_idx = jnp.nonzero(m)
        edge_index_dict[et] = (s_idx.astype(jnp.int32), t_idx.astype(jnp.int32))
    ref = ref_forward(x_dict, edge_index_dict, params, num_heads, out_dim)
    for nt in node_types:
        np.testing.assert_allclose(np.asarray(out[nt]), np.asarray(ref[nt]),
                                   rtol=5e-2, atol=5e-2)

    print("KERNEL_OK")
</pallas_src>

<mosaic_0001>
module attributes {stable_mosaic.version = 11 : i64} {
  func.func @_qkv_kernel(%arg0: i32, %arg1: memref<16x32xf32, #tpu.memory_space<vmem>>, %arg2: memref<32x32xbf16, #tpu.memory_space<vmem>>, %arg3: memref<32x32xbf16, #tpu.memory_space<vmem>>, %arg4: memref<32x32xbf16, #tpu.memory_space<vmem>>, %arg5: memref<1x32xf32, #tpu.memory_space<vmem>>, %arg6: memref<1x32xf32, #tpu.memory_space<vmem>>, %arg7: memref<1x32xf32, #tpu.memory_space<vmem>>, %arg8: memref<16x32xbf16, #tpu.memory_space<vmem>>, %arg9: memref<16x32xbf16, #tpu.memory_space<vmem>>, %arg10: memref<16x32xbf16, #tpu.memory_space<vmem>>) attributes {dimension_semantics = [#tpu.dimension_semantics<parallel>], iteration_bounds = array<i64: 1>, scalar_prefetch = 0 : i64, scratch_operands = 0 : i64, tpu.core_type = #tpu.core_type<tc>, window_params = [{transform_indices = @transform_0, window_bounds = array<i64: 16, 32>}, {pipeline_mode = #tpu.pipeline_mode<synchronous>, transform_indices = @transform_1, window_bounds = array<i64: 32, 32>}, {pipeline_mode = #tpu.pipeline_mode<synchronous>, transform_indices = @transform_2, window_bounds = array<i64: 32, 32>}, {pipeline_mode = #tpu.pipeline_mode<synchronous>, transform_indices = @transform_3, window_bounds = array<i64: 32, 32>}, {pipeline_mode = #tpu.pipeline_mode<synchronous>, transform_indices = @transform_4, window_bounds = array<i64: 1, 32>}, {pipeline_mode = #tpu.pipeline_mode<synchronous>, transform_indices = @transform_5, window_bounds = array<i64: 1, 32>}, {pipeline_mode = #tpu.pipeline_mode<synchronous>, transform_indices = @transform_6, window_bounds = array<i64: 1, 32>}, {transform_indices = @transform_7, window_bounds = array<i64: 16, 32>}, {transform_indices = @transform_8, window_bounds = array<i64: 16, 32>}, {transform_indices = @transform_9, window_bounds = array<i64: 16, 32>}]} {
    %c0 = arith.constant 0 : index
    %c0_0 = arith.constant 0 : index
    %0 = vector.load %arg1[%c0, %c0_0] : memref<16x32xf32, #tpu.memory_space<vmem>>, vector<16x32xf32>
    %1 = arith.truncf %0 : vector<16x32xf32> to vector<16x32xbf16>
    %c0_1 = arith.constant 0 : index
    %c0_2 = arith.constant 0 : index
    %2 = vector.load %arg2[%c0_1, %c0_2] : memref<32x32xbf16, #tpu.memory_space<vmem>>, vector<32x32xbf16>
    %cst = arith.constant dense<0.000000e+00> : vector<16x32xf32>
    %3 = tpu.matmul %1, %2, %cst {dimension_numbers = #tpu.dot_dimension_numbers<[1], [0], [0], [1], [0, 0, 1, 1], [], []>} : vector<16x32xbf16>, vector<32x32xbf16>, vector<16x32xf32> -> vector<16x32xf32>
    %c0_3 = arith.constant 0 : index
    %c0_4 = arith.constant 0 : index
    %4 = vector.load %arg5[%c0_3, %c0_4] : memref<1x32xf32, #tpu.memory_space<vmem>>, vector<1x32xf32>
    %5 = vector.broadcast %4 : vector<1x32xf32> to vector<16x32xf32>
    %6 = arith.addf %3, %5 : vector<16x32xf32>
    %7 = arith.truncf %6 : vector<16x32xf32> to vector<16x32xbf16>
    %c0_5 = arith.constant 0 : index
    %c0_6 = arith.constant 0 : index
    %8 = vector.load %arg8[%c0_5, %c0_6] : memref<16x32xbf16, #tpu.memory_space<vmem>>, vector<16x32xbf16>
    tpu.vector_store %arg8[%c0_5, %c0_6], %7 {strides = array<i32>} : memref<16x32xbf16, #tpu.memory_space<vmem>>, vector<16x32xbf16>,
    %c0_7 = arith.constant 0 : index
    %c0_8 = arith.constant 0 : index
    %9 = vector.load %arg3[%c0_7, %c0_8] : memref<32x32xbf16, #tpu.memory_space<vmem>>, vector<32x32xbf16>
    %cst_9 = arith.constant dense<0.000000e+00> : vector<16x32xf32>
    %10 = tpu.matmul %1, %9, %cst_9 {dimension_numbers = #tpu.dot_dimension_numbers<[1], [0], [0], [1], [0, 0, 1, 1], [], []>} : vector<16x32xbf16>, vector<32x32xbf16>, vector<16x32xf32> -> vector<16x32xf32>
    %c0_10 = arith.constant 0 : index
    %c0_11 = arith.constant 0 : index
    %11 = vector.load %arg6[%c0_10, %c0_11] : memref<1x32xf32, #tpu.memory_space<vmem>>, vector<1x32xf32>
    %12 = vector.broadcast %11 : vector<1x32xf32> to vector<16x32xf32>
    %13 = arith.addf %10, %12 : vector<16x32xf32>
    %14 = arith.truncf %13 : vector<16x32xf32> to vector<16x32xbf16>
    %c0_12 = arith.constant 0 : index
    %c0_13 = arith.constant 0 : index
    %15 = vector.load %arg9[%c0_12, %c0_13] : memref<16x32xbf16, #tpu.memory_space<vmem>>, vector<16x32xbf16>
    tpu.vector_store %arg9[%c0_12, %c0_13], %14 {strides = array<i32>} : memref<16x32xbf16, #tpu.memory_space<vmem>>, vector<16x32xbf16>,
    %c0_14 = arith.constant 0 : index
    %c0_15 = arith.constant 0 : index
    %16 = vector.load %arg4[%c0_14, %c0_15] : memref<32x32xbf16, #tpu.memory_space<vmem>>, vector<32x32xbf16>
    %cst_16 = arith.constant dense<0.000000e+00> : vector<16x32xf32>
    %17 = tpu.matmul %1, %16, %cst_16 {dimension_numbers = #tpu.dot_dimension_numbers<[1], [0], [0], [1], [0, 0, 1, 1], [], []>} : vector<16x32xbf16>, vector<32x32xbf16>, vector<16x32xf32> -> vector<16x32xf32>
    %c0_17 = arith.constant 0 : index
    %c0_18 = arith.constant 0 : index
    %18 = vector.load %arg7[%c0_17, %c0_18] : memref<1x32xf32, #tpu.memory_space<vmem>>, vector<1x32xf32>
    %19 = vector.broadcast %18 : vector<1x32xf32> to vector<16x32xf32>
    %20 = arith.addf %17, %19 : vector<16x32xf32>
    %21 = arith.truncf %20 : vector<16x32xf32> to vector<16x32xbf16>
    %c0_19 = arith.constant 0 : index
    %c0_20 = arith.constant 0 : index
    %22 = vector.load %arg10[%c0_19, %c0_20] : memref<16x32xbf16, #tpu.memory_space<vmem>>, vector<16x32xbf16>
    tpu.vector_store %arg10[%c0_19, %c0_20], %21 {strides = array<i32>} : memref<16x32xbf16, #tpu.memory_space<vmem>>, vector<16x32xbf16>,
    return
  }
  func.func @transform_0(%arg0: i32) -> (i32, i32) {
    %c0_i32 = arith.constant 0 : i32
    %c0_i32_0 = arith.constant 0 : i32
    return %arg0, %c0_i32 : i32, i32
  }
  func.func @transform_1(%arg0: i32) -> (i32, i32) {
    %c0_i32 = arith.constant 0 : i32
    %c0_i32_0 = arith.constant 0 : i32
    %c0_i32_1 = arith.constant 0 : i32
    return %c0_i32, %c0_i32_0 : i32, i32
  }
  func.func @transform_2(%arg0: i32) -> (i32, i32) {
    %c0_i32 = arith.constant 0 : i32
    %c0_i32_0 = arith.constant 0 : i32
    %c0_i32_1 = arith.constant 0 : i32
    return %c0_i32, %c0_i32_0 : i32, i32
  }
  func.func @transform_3(%arg0: i32) -> (i32, i32) {
    %c0_i32 = arith.constant 0 : i32
    %c0_i32_0 = arith.constant 0 : i32
    %c0_i32_1 = arith.constant 0 : i32
    return %c0_i32, %c0_i32_0 : i32, i32
  }
  func.func @transform_4(%arg0: i32) -> (i32, i32) {
    %c0_i32 = arith.constant 0 : i32
    %c0_i32_0 = arith.constant 0 : i32
    %c0_i32_1 = arith.constant 0 : i32
    return %c0_i32, %c0_i32_0 : i32, i32
  }
  func.func @transform_5(%arg0: i32) -> (i32, i32) {
    %c0_i32 = arith.constant 0 : i32
    %c0_i32_0 = arith.constant 0 : i32
    %c0_i32_1 = arith.constant 0 : i32
    return %c0_i32, %c0_i32_0 : i32, i32
  }
  func.func @transform_6(%arg0: i32) -> (i32, i32) {
    %c0_i32 = arith.constant 0 : i32
    %c0_i32_0 = arith.constant 0 : i32
    %c0_i32_1 = arith.constant 0 : i32
    return %c0_i32, %c0_i32_0 : i32, i32
  }
  func.func @transform_7(%arg0: i32) -> (i32, i32) {
    %c0_i32 = arith.constant 0 : i32
    %c0_i32_0 = arith.constant 0 : i32
    return %arg0, %c0_i32 : i32, i32
  }
  func.func @transform_8(%arg0: i32) -> (i32, i32) {
    %c0_i32 = arith.constant 0 : i32
    %c0_i32_0 = arith.constant 0 : i32
    return %arg0, %c0_i32 : i32, i32
  }
  func.func @transform_9(%arg0: i32) -> (i32, i32) {
    %c0_i32 = arith.constant 0 : i32
    %c0_i32_0 = arith.constant 0 : i32
    return %arg0, %c0_i32 : i32, i32
  }
}

</mosaic_0001>

<llo_original>
// kernel: tpu_custom_call.1
$region0: #{tpu_custom_call.1}
  #allocation0 [shape = 'u32[]', space=smem, size = 0x4, offset = 0x4, fixed_abs, tag = 'smem constant byte address 0x4 - core index']
  #allocation1 [shape = 'u32[72,128]{1,0:T(1,128)}', space=vmem, size = 0x9000, scoped, tag = 'internal scratch']
  %s0 = inlined_call_operand.hbm [shape: f32[16,32], index: 0, kind: input, shape index: {}]
  %s1 = inlined_call_operand.hbm [shape: bf16[32,32], index: 1, kind: input, shape index: {}]
  %s2 = inlined_call_operand.hbm [shape: bf16[32,32], index: 2, kind: input, shape index: {}]
  %s3 = inlined_call_operand.hbm [shape: bf16[32,32], index: 3, kind: input, shape index: {}]
  %s4 = inlined_call_operand.vmem [shape: f32[1,32], index: 4, kind: input, shape index: {}]
  %s5 = inlined_call_operand.vmem [shape: f32[1,32], index: 5, kind: input, shape index: {}]
  %s6 = inlined_call_operand.vmem [shape: f32[1,32], index: 6, kind: input, shape index: {}]
  %s7 = inlined_call_operand.hbm [shape: bf16[16,32], index: 7, kind: output, shape index: {0}]
  %s8 = inlined_call_operand.hbm [shape: bf16[16,32], index: 8, kind: output, shape index: {1}]
  %s9 = inlined_call_operand.hbm [shape: bf16[16,32], index: 9, kind: output, shape index: {2}]
  %10 = xla_tuple %s7, %s8, %s9
  %s11 = sld [smem:[#allocation0]]
  $region70: #{tpu_custom_call.1} parent=0
    _
  %s13 = ssub.s32 1, %s11
  %s14 = scalar_select 0, %s13, %s11
  $region1: #{tpu_custom_call.1} parent=0
    #allocation2 [shape = 'u8[8192]{0}', space=vmem, size = 0x2000, scoped, tag = 'input window, operand 0, single buffered']
    #allocation3 [shape = 's32[1]{0}', space=sflag, size = 0x4, scoped, tag = 'scoped memory for tpu_custom_call.1']
    #allocation4 [shape = 's32[1]{0}', space=sflag, size = 0x4, scoped, tag = 'scoped memory for tpu_custom_call.1']
    #allocation5 [shape = 'u8[8192]{0}', space=vmem, size = 0x2000, scoped, tag = 'input window, operand 1, single buffered']
    #allocation6 [shape = 's32[1]{0}', space=sflag, size = 0x4, scoped, tag = 'scoped memory for tpu_custom_call.1']
    #allocation7 [shape = 'u8[8192]{0}', space=vmem, size = 0x2000, scoped, tag = 'input window, operand 2, single buffered']
    #allocation8 [shape = 'u8[8192]{0}', space=vmem, size = 0x2000, scoped, tag = 'input window, operand 3, single buffered']
    #allocation9 [shape = 's32[1]{0}', space=sflag, size = 0x4, scoped, tag = 'scoped memory for tpu_custom_call.1']
    #allocation10 [shape = 'u8[4096]{0}', space=vmem, size = 0x1000, scoped, tag = 'output window, operand 0, single buffered']
    #allocation11 [shape = 'u8[4096]{0}', space=vmem, size = 0x1000, scoped, tag = 'output window, operand 1, single buffered']
    #allocation12 [shape = 's32[1]{0}', space=sflag, size = 0x4, scoped, tag = 'scoped memory for tpu_custom_call.1']
    #allocation13 [shape = 'u8[4096]{0}', space=vmem, size = 0x1000, scoped, tag = 'output window, operand 2, single buffered']
    %15 = vsyncpa [#allocation3], 0
    %16 = vsyncpa [#allocation6], 0
    %17 = vsyncpa [#allocation9], 0
    %18 = vsyncpa [#allocation4], 0
    %19 = vsyncpa [#allocation12], 0
    // Predicated region
    $region2: #{tpu_custom_call.1} parent=1 // pred_check
      _
    $region3: #{tpu_custom_call.1} parent=1 // pred_check_branch
      %21 = sbr.rel (0) target = $region5
    $region4: #{tpu_custom_call.1} parent=1 // pred_region
      %23 = vsyncadd [#allocation3], 0
      %s24 = sshll.u32 %s0, 4
      %s25 = int_to_ptr.hbm [resolvable:$true] %s24
      %s26 = sshll.u32 [#allocation2], 4
      %s27 = int_to_ptr.vmem [resolvable:$true] %s26
      %32 = dma.hbm_to_vmem [thread:$0]  %s25, 256, %s27, [#allocation3], 128, 128, 8
    $region5: #{tpu_custom_call.1} parent=1 // pred_fallthru
      _
    // Predicated region
    $region6: #{tpu_custom_call.1} parent=1 // pred_check
      _
    $region7: #{tpu_custom_call.1} parent=1 // pred_check_branch
      %34 = sbr.rel (0) target = $region9
    $region8: #{tpu_custom_call.1} parent=1 // pred_region
      %36 = vsyncadd [#allocation6], 0
      %s37 = sshll.u32 %s1, 4
      %s38 = int_to_ptr.hbm [resolvable:$true] %s37
      %s39 = sshll.u32 [#allocation5], 4
      %s40 = int_to_ptr.vmem [resolvable:$true] %s39
      %45 = dma.hbm_to_vmem [thread:$0]  %s38, 256, %s40, [#allocation6], 64, 64, 4
    $region9: #{tpu_custom_call.1} parent=1 // pred_fallthru
      _
    // Predicated region
    $region10: #{tpu_custom_call.1} parent=1 // pred_check
      _
    $region11: #{tpu_custom_call.1} parent=1 // pred_check_branch
      %47 = sbr.rel (0) target = $region13
    $region12: #{tpu_custom_call.1} parent=1 // pred_region
      %49 = vsyncadd [#allocation6], 0
      %s50 = sshll.u32 %s2, 4
      %s51 = int_to_ptr.hbm [resolvable:$true] %s50
      %s52 = sshll.u32 [#allocation7], 4
      %s53 = int_to_ptr.vmem [resolvable:$true] %s52
      %58 = dma.hbm_to_vmem [thread:$0]  %s51, 256, %s53, [#allocation6], 64, 64, 4
    $region13: #{tpu_custom_call.1} parent=1 // pred_fallthru
      _
    // Predicated region
    $region14: #{tpu_custom_call.1} parent=1 // pred_check
      _
    $region15: #{tpu_custom_call.1} parent=1 // pred_check_branch
      %60 = sbr.rel (0) target = $region17
    $region16: #{tpu_custom_call.1} parent=1 // pred_region
      %62 = vsyncadd [#allocation9], 0
      %s63 = sshll.u32 %s3, 4
      %s64 = int_to_ptr.hbm [resolvable:$true] %s63
      %s65 = sshll.u32 [#allocation8], 4
      %s66 = int_to_ptr.vmem [resolvable:$true] %s65
      %71 = dma.hbm_to_vmem [thread:$0]  %s64, 256, %s66, [#allocation9], 64, 64, 4
    $region17: #{tpu_custom_call.1} parent=1 // pred_fallthru
      _
    // Predicated region
    $region18: #{tpu_custom_call.1} parent=1 // pred_check
      _
    $region19: #{tpu_custom_call.1} parent=1 // pred_check_branch
      %73 = sbr.rel (0) target = $region21
    $region20: #{tpu_custom_call.1} parent=1 // pred_region
      _
    $region21: #{tpu_custom_call.1} parent=1 // pred_fallthru
      _
    // Predicated region
    $region22: #{tpu_custom_call.1} parent=1 // pred_check
      _
    $region23: #{tpu_custom_call.1} parent=1 // pred_check_branch
      %75 = sbr.rel (0) target = $region25
    $region24: #{tpu_custom_call.1} parent=1 // pred_region
      _
    $region25: #{tpu_custom_call.1} parent=1 // pred_fallthru
      _
    // Predicated region
    $region26: #{tpu_custom_call.1} parent=1 // pred_check
      _
    $region27: #{tpu_custom_call.1} parent=1 // pred_check_branch
      %77 = sbr.rel (0) target = $region29
    $region28: #{tpu_custom_call.1} parent=1 // pred_region
      _
    $region29: #{tpu_custom_call.1} parent=1 // pred_fallthru
      _
    // Predicated region
    $region30: #{tpu_custom_call.1} parent=1 // pred_check
      _
    $region31: #{tpu_custom_call.1} parent=1 // pred_check_branch
      %79 = sbr.rel (0) target = $region33
    $region32: #{tpu_custom_call.1} parent=1 // pred_region
      %81 = dma.done [#allocation3], 256
    $region33: #{tpu_custom_call.1} parent=1 // pred_fallthru
      _
    // Predicated region
    $region34: #{tpu_custom_call.1} parent=1 // pred_check
      _
    $region35: #{tpu_custom_call.1} parent=1 // pred_check_branch
      %83 = sbr.rel (0) target = $region37
    $region36: #{tpu_custom_call.1} parent=1 // pred_region
      %85 = dma.done [#allocation6], 256
    $region37: #{tpu_custom_call.1} parent=1 // pred_fallthru
      _
    // Predicated region
    $region38: #{tpu_custom_call.1} parent=1 // pred_check
      _
    $region39: #{tpu_custom_call.1} parent=1 // pred_check_branch
      %87 = sbr.rel (0) target = $region41
    $region40: #{tpu_custom_call.1} parent=1 // pred_region
      %89 = dma.done [#allocation6], 256
    $region41: #{tpu_custom_call.1} parent=1 // pred_fallthru
      _
    // Predicated region
    $region42: #{tpu_custom_call.1} parent=1 // pred_check
      _
    $region43: #{tpu_custom_call.1} parent=1 // pred_check_branch
      %91 = sbr.rel (0) target = $region45
    $region44: #{tpu_custom_call.1} parent=1 // pred_region
      %93 = dma.done [#allocation9], 256
    $region45: #{tpu_custom_call.1} parent=1 // pred_fallthru
      _
    %v95 = vld [vmem:[#allocation2] sm:$0xff]
    %v96 = vld [vmem:[#allocation2 + $0x8] sm:$0xff]
    %v97 = vpack.c.bf16 %v96, %v95
    %v98 = vld [vmem:[#allocation5] sm:$0xf]
    %v99 = vld [vmem:[#allocation5 + $0x4] sm:$0xf]
    %v100 = vld [vmem:[#allocation5 + $0x8] sm:$0xf]
    %v101 = vld [vmem:[#allocation5 + $0xc] sm:$0xf]
    %v102 = vld [vmem:[%s4] sm:$0x1]
    %v104 = vperm.slane %v102, 0
    %v110 = vunpack.c.l.b16 %v98
    %v111 = vunpack.c.l.b16 %v99
    %v112 = vunpack.c.l.b16 %v100
    %v113 = vunpack.c.l.b16 %v101
    %v114 = vpack.c.b16 %v111, %v110
    %v115 = vpack.c.b16 %v113, %v112
    %vm118 = vcmask 261120
    %v120 = vsel %vm118, %v97, 0
    %122 = vmatpush.bf16.msra.mxu0 0
    %123 = vmatpush.bf16.msra.mxu0 0
    %124 = vmatpush.bf16.msra.mxu0 0
    %125 = vmatpush.bf16.msra.mxu0 0
    %126 = vmatpush.bf16.msra.mxu0 0
    %127 = vmatpush.bf16.msra.mxu0 0
    %128 = vmatpush.bf16.msra.mxu0 %v115
    %129 = vmatpush.bf16.msra.mxu0 %v114
    %130 = vmatmul.bf16.gmra.mxu0 %v120
    %v131 = vpop.f32.mrf.mxu0
    %v132 = vadd.f32 %v104, %v131
    %v133 = vpop.f32.mrf.mxu0
    %v134 = vadd.f32 %v104, %v133
    %135 = vdwg.mxu0
    %v136 = vpack.c.bf16 %v132, %v132
    %v137 = vpack.c.bf16 %v134, %v134
    %vm138 = vcmask 257024
    %139 = vst.msk [vmem:[#allocation10] sm:$0xf] %vm138, %v136
    %140 = vst.msk [vmem:[#allocation10 + $0x4] sm:$0xf] %vm138, %v137
    %v141 = vld [vmem:[#allocation7] sm:$0xf]
    %v142 = vld [vmem:[#allocation7 + $0x4] sm:$0xf]
    %v143 = vld [vmem:[#allocation7 + $0x8] sm:$0xf]
    %v144 = vld [vmem:[#allocation7 + $0xc] sm:$0xf]
    %v145 = vld [vmem:[%s5] sm:$0x1]
    %v147 = vperm.slane %v145, 0
    %v153 = vunpack.c.l.b16 %v141
    %v154 = vunpack.c.l.b16 %v142
    %v155 = vunpack.c.l.b16 %v143
    %v156 = vunpack.c.l.b16 %v144
    %v157 = vpack.c.b16 %v154, %v153
    %v158 = vpack.c.b16 %v156, %v155
    %161 = vmatpush.bf16.msra.mxu0 0
    %162 = vmatpush.bf16.msra.mxu0 0
    %163 = vmatpush.bf16.msra.mxu0 0
    %164 = vmatpush.bf16.msra.mxu0 0
    %165 = vmatpush.bf16.msra.mxu0 0
    %166 = vmatpush.bf16.msra.mxu0 0
    %167 = vmatpush.bf16.msra.mxu0 %v158
    %168 = vmatpush.bf16.msra.mxu0 %v157
    %169 = vmatmul.bf16.gmra.mxu0 %v120
    %v170 = vpop.f32.mrf.mxu0
    %v171 = vadd.f32 %v147, %v170
    %v172 = vpop.f32.mrf.mxu0
    %v173 = vadd.f32 %v147, %v172
    %174 = vdwg.mxu0
    %v175 = vpack.c.bf16 %v171, %v171
    %v176 = vpack.c.bf16 %v173, %v173
    %177 = vst.msk [vmem:[#allocation11] sm:$0xf] %vm138, %v175
    %178 = vst.msk [vmem:[#allocation11 + $0x4] sm:$0xf] %vm138, %v176
    %v179 = vld [vmem:[#allocation8] sm:$0xf]
    %v180 = vld [vmem:[#allocation8 + $0x4] sm:$0xf]
    %v181 = vld [vmem:[#allocation8 + $0x8] sm:$0xf]
    %v182 = vld [vmem:[#allocation8 + $0xc] sm:$0xf]
    %v183 = vld [vmem:[%s6] sm:$0x1]
    %v185 = vperm.slane %v183, 0
    %v191 = vunpack.c.l.b16 %v179
    %v192 = vunpack.c.l.b16 %v180
    %v193 = vunpack.c.l.b16 %v181
    %v194 = vunpack.c.l.b16 %v182
    %v195 = vpack.c.b16 %v192, %v191
    %v196 = vpack.c.b16 %v194, %v193
    %199 = vmatpush.bf16.msra.mxu0 0
    %200 = vmatpush.bf16.msra.mxu0 0
    %201 = vmatpush.bf16.msra.mxu0 0
    %202 = vmatpush.bf16.msra.mxu0 0
    %203 = vmatpush.bf16.msra.mxu0 0
    %204 = vmatpush.bf16.msra.mxu0 0
    %205 = vmatpush.bf16.msra.mxu0 %v196
    %206 = vmatpush.bf16.msra.mxu0 %v195
    %207 = vmatmul.bf16.gmra.mxu0 %v120
    %v208 = vpop.f32.mrf.mxu0
    %v209 = vadd.f32 %v185, %v208
    %v210 = vpop.f32.mrf.mxu0
    %v211 = vadd.f32 %v185, %v210
    %212 = vdwg.mxu0
    %v213 = vpack.c.bf16 %v209, %v209
    %v214 = vpack.c.bf16 %v211, %v211
    %215 = vst.msk [vmem:[#allocation13] sm:$0xf] %vm138, %v213
    %216 = vst.msk [vmem:[#allocation13 + $0x4] sm:$0xf] %vm138, %v214
    // Predicated region
    $region46: #{tpu_custom_call.1} parent=1 // pred_check
      _
    $region47: #{tpu_custom_call.1} parent=1 // pred_check_branch
      %218 = sbr.rel (0) target = $region49
    $region48: #{tpu_custom_call.1} parent=1 // pred_region
      %220 = vsyncadd [#allocation4], 0
      %s221 = sshll.u32 [#allocation10], 4
      %s222 = int_to_ptr.vmem [resolvable:$true] %s221
      %s223 = sshll.u32 %s7, 4
      %s224 = int_to_ptr.hbm [resolvable:$true] %s223
      %229 = dma.vmem_to_hbm [thread:$0]  %s222, 128, %s224, [#allocation4], 64, 64, 4
    $region49: #{tpu_custom_call.1} parent=1 // pred_fallthru
      _
    // Predicated region
    $region50: #{tpu_custom_call.1} parent=1 // pred_check
      _
    $region51: #{tpu_custom_call.1} parent=1 // pred_check_branch
      %231 = sbr.rel (0) target = $region53
    $region52: #{tpu_custom_call.1} parent=1 // pred_region
      %233 = vsyncadd [#allocation12], 0
      %s234 = sshll.u32 [#allocation11], 4
      %s235 = int_to_ptr.vmem [resolvable:$true] %s234
      %s236 = sshll.u32 %s8, 4
      %s237 = int_to_ptr.hbm [resolvable:$true] %s236
      %242 = dma.vmem_to_hbm [thread:$0]  %s235, 128, %s237, [#allocation12], 64, 64, 4
    $region53: #{tpu_custom_call.1} parent=1 // pred_fallthru
      _
    // Predicated region
    $region54: #{tpu_custom_call.1} parent=1 // pred_check
      _
    $region55: #{tpu_custom_call.1} parent=1 // pred_check_branch
      %244 = sbr.rel (0) target = $region57
    $region56: #{tpu_custom_call.1} parent=1 // pred_region
      %246 = vsyncadd [#allocation12], 0
      %s247 = sshll.u32 [#allocation13], 4
      %s248 = int_to_ptr.vmem [resolvable:$true] %s247
      %s249 = sshll.u32 %s9, 4
      %s250 = int_to_ptr.hbm [resolvable:$true] %s249
      %255 = dma.vmem_to_hbm [thread:$0]  %s248, 128, %s250, [#allocation12], 64, 64, 4
    $region57: #{tpu_custom_call.1} parent=1 // pred_fallthru
      _
    // Predicated region
    $region58: #{tpu_custom_call.1} parent=1 // pred_check
      _
    $region59: #{tpu_custom_call.1} parent=1 // pred_check_branch
      %257 = sbr.rel (0) target = $region61
    $region60: #{tpu_custom_call.1} parent=1 // pred_region
      %259 = dma.done [#allocation4], 128
    $region61: #{tpu_custom_call.1} parent=1 // pred_fallthru
      _
    // Predicated region
    $region62: #{tpu_custom_call.1} parent=1 // pred_check
      _
    $region63: #{tpu_custom_call.1} parent=1 // pred_check_branch
      %261 = sbr.rel (0) target = $region65
    $region64: #{tpu_custom_call.1} parent=1 // pred_region
      %263 = dma.done [#allocation12], 128
    $region65: #{tpu_custom_call.1} parent=1 // pred_fallthru
      _
    // Predicated region
    $region66: #{tpu_custom_call.1} parent=1 // pred_check
      _
    $region67: #{tpu_custom_call.1} parent=1 // pred_check_branch
      %265 = sbr.rel (0) target = $region69
    $region68: #{tpu_custom_call.1} parent=1 // pred_region
      %267 = dma.done [#allocation12], 128
    $region69: #{tpu_custom_call.1} parent=1 // pred_fallthru
      _
    %268 = vsyncpa [#allocation3], 1
    %269 = vsyncpa [#allocation6], 1
    %270 = vsyncpa [#allocation9], 1
    %271 = vsyncpa [#allocation4], 1
    %272 = vsyncpa [#allocation12], 1

</llo_original>
